<compile_context>
chip_gen: v5e
topology: v5e:2x2
jax: 0.10.0
libtpu: 0.0.40
codegen_flags: <defaults>
</compile_context>

<pallas_src>
import jax
import jax.numpy as jnp
from jax.experimental import pallas as pl
from jax.experimental.pallas import tpu as pltpu

_SUBLANE = 8
_MIN_PIPELINE_STEPS = 8           # target grid depth for DMA/compute overlap
_SMALL_TOTAL_BYTES = 4 << 20      # below this, pipeline depth is irrelevant
_VMEM_LIMIT_BYTES = 32 << 20      # explicit scoped-VMEM limit (safe v5e..v7x)


def _per_half_block_budget_bytes():
    """Per-half (== per-output) block byte budget, tuned per TPU generation."""
    try:
        kind = jax.devices()[0].device_kind.lower()
    except Exception:
        kind = ""
    if "v5 lite" in kind or "v5e" in kind or "v5lite" in kind:
        # v5e: 16 MiB default scoped VMEM -> keep double-buffered blocks ~6 MiB.
        return 1 << 20
    if "v7" in kind:
        # v7x: 3.2 TB/s HBM -> bigger blocks to amortize ~0.35us/step overhead.
        return 4 << 20
    return 2 << 20                 # v6e / default


def _min_inner_blocks(n_batch, total_bytes):
    """Minimum blocks along the inner grid axis (pipelining + megacore)."""
    if total_bytes <= _SMALL_TOTAL_BYTES:
        return 1
    # >= ~8 total grid steps for DMA/compute overlap; when n_batch == 1 this
    # also guarantees >=2 blocks on a "parallel" axis for v7x's two TCs.
    return max(-(-_MIN_PIPELINE_STEPS // n_batch), 1)


def _choose_tile(extent, row_bytes, budget_bytes, min_blocks, pack):
    """Tile a sublane-like axis: a multiple of `pack`, or the full extent."""
    t_budget = max(pack, (budget_bytes // max(row_bytes, 1)) // pack * pack)
    t_depth = max(pack, (extent // max(min_blocks, 1)) // pack * pack)
    t = min(t_budget, t_depth)
    if t >= extent:
        return extent              # full extent is always a legal block dim
    return t


def _lane_width(total_half):
    """Largest multiple of 128 (<=1024) that evenly divides a half-slab."""
    for lanes in (1024, 896, 768, 640, 512, 384, 256, 128):
        if total_half % lanes == 0:
            return lanes
    return None


def _glu_kernel(x_ref, o_ref):
    # x_ref: (2, tm, L) VMEM tile; leading-axis indexing, no sublane slicing.
    a = x_ref[0]
    b = x_ref[1]
    # sigmoid -> EUP, multiply -> VPU; single cast at the end.
    # NOTE: trailing (padded) blocks may hold garbage; sigmoid/mul over it is
    # harmless because Pallas drops out-of-bounds writes.
    o_ref[...] = (a * jax.nn.sigmoid(b)).astype(o_ref.dtype)


def glu(x):
    """NCHW GLU: returns x[:, :C//2] * sigmoid(x[:, C//2:])."""
    n, c, h, w = x.shape
    assert c % 2 == 0, "channels dont divide 2!"
    nc = c // 2
    hw = h * w
    total_half = nc * hw
    itemsize = x.dtype.itemsize
    pack = max(_SUBLANE, (_SUBLANE * 4) // itemsize)   # 8 f32 / 16 bf16 / 32 i8

    budget = _per_half_block_budget_bytes()
    min_blocks = _min_inner_blocks(n, 3 * n * total_half * itemsize)

    lanes = _lane_width(total_half)
    if lanes is not None:
        # Fast path: each half is one contiguous, lane-dense (rows, lanes) slab.
        rows = total_half // lanes
        t_rows = _choose_tile(rows, lanes * itemsize, budget, min_blocks, pack)
        x_view = x.reshape(n, 2, rows, lanes)
        grid = (n, pl.cdiv(rows, t_rows))
        in_spec = pl.BlockSpec((None, 2, t_rows, lanes),
                               lambda i, j: (i, 0, j, 0))
        out_spec = pl.BlockSpec((None, t_rows, lanes), lambda i, j: (i, j, 0))
        out_shape = jax.ShapeDtypeStruct((n, rows, lanes), x.dtype)
    else:
        # Fallback (nc*hw not a multiple of 128, e.g. 7x7 maps with odd nc):
        # keep (nc, hw); tile the channel (sublane) axis, hw stays the full
        # lane extent so DMAs remain contiguous per channel tile.
        # TODO(synk): also tile hw if a minimal (pack, hw) channel block ever
        # exceeds the VMEM budget (pathological huge odd spatial extents).
        t_nc = _choose_tile(nc, hw * itemsize, budget, min_blocks, pack)
        x_view = x.reshape(n, 2, nc, hw)
        grid = (n, pl.cdiv(nc, t_nc))
        in_spec = pl.BlockSpec((None, 2, t_nc, hw), lambda i, j: (i, 0, j, 0))
        out_spec = pl.BlockSpec((None, t_nc, hw), lambda i, j: (i, j, 0))
        out_shape = jax.ShapeDtypeStruct((n, nc, hw), x.dtype)

    total = n * total_half
    cost = pl.CostEstimate(
        flops=4 * total,                        # mul + sigmoid arithmetic
        transcendentals=total,                  # one exp per gated element
        bytes_accessed=3 * total * itemsize,    # read 2 halves, write 1
    )

    out = pl.pallas_call(
        _glu_kernel,
        out_shape=out_shape,
        grid=grid,
        in_specs=[in_spec],
        out_specs=out_spec,
        compiler_params=pltpu.CompilerParams(
            dimension_semantics=("parallel", "parallel"),
            vmem_limit_bytes=_VMEM_LIMIT_BYTES,
        ),
        cost_estimate=cost,
    )(x_view)

    return out.reshape(n, nc, h, w)


def _ref_glu(x):
    nc = x.shape[1] // 2
    return x[:, :nc] * jax.nn.sigmoid(x[:, nc:])


if __name__ == "__main__":
    key = jax.random.PRNGKey(0)
    k0, k1, k2 = jax.random.split(key, 3)

    # Primary small NCHW input consistent with the module's forward.
    x = jax.random.normal(k0, (2, 4, 16, 16), dtype=jnp.float32)
    y = jax.block_until_ready(glu(x))
    assert y.shape == (2, 2, 16, 16)
    assert jnp.allclose(y, _ref_glu(x), atol=1e-5, rtol=1e-5)

    # Tiled fast path: single batch -> forces >=8 inner blocks (pipeline +
    # megacore sharding) and exercises the row-tiled grid.
    x_big = jax.random.normal(k1, (1, 128, 128, 128), dtype=jnp.float32)
    y_big = jax.block_until_ready(glu(x_big))
    assert jnp.allclose(y_big, _ref_glu(x_big), atol=1e-5, rtol=1e-5)

    # Fallback path: nc*hw not a multiple of 128 (7x7 maps, odd nc), bf16.
    x_odd = jax.random.normal(k2, (2, 6, 7, 7), dtype=jnp.bfloat16)
    y_odd = jax.block_until_ready(glu(x_odd))
    assert jnp.allclose(y_odd.astype(jnp.float32),
                        _ref_glu(x_odd).astype(jnp.float32),
                        atol=2e-2, rtol=2e-2)

    print("KERNEL_OK")
</pallas_src>

<mosaic_0001>
module attributes {stable_mosaic.version = 11 : i64} {
  func.func @_glu_kernel(%arg0: i32, %arg1: i32, %arg2: memref<1x2x1x512xf32, #tpu.memory_space<vmem>>, %arg3: memref<1x1x512xf32, #tpu.memory_space<vmem>>) attributes {dimension_semantics = [#tpu.dimension_semantics<parallel>, #tpu.dimension_semantics<parallel>], iteration_bounds = array<i64: 2, 1>, scalar_prefetch = 0 : i64, scratch_operands = 0 : i64, tpu.core_type = #tpu.core_type<tc>, window_params = [{transform_indices = @transform_0, window_bounds = array<i64: 1, 2, 1, 512>}, {transform_indices = @transform_1, window_bounds = array<i64: 1, 1, 512>}]} {
    %c0 = arith.constant 0 : index
    %c0_0 = arith.constant 0 : index
    %c0_1 = arith.constant 0 : index
    %c0_2 = arith.constant 0 : index
    %0 = vector.load %arg2[%c0, %c0_0, %c0_1, %c0_2] : memref<1x2x1x512xf32, #tpu.memory_space<vmem>>, vector<1x1x1x512xf32>
    %1 = vector.shape_cast %0 : vector<1x1x1x512xf32> to vector<1x512xf32>
    %c0_3 = arith.constant 0 : index
    %c1 = arith.constant 1 : index
    %c0_4 = arith.constant 0 : index
    %c0_5 = arith.constant 0 : index
    %2 = vector.load %arg2[%c0_3, %c1, %c0_4, %c0_5] : memref<1x2x1x512xf32, #tpu.memory_space<vmem>>, vector<1x1x1x512xf32>
    %3 = vector.shape_cast %2 : vector<1x1x1x512xf32> to vector<1x512xf32>
    %4 = arith.negf %3 : vector<1x512xf32>
    %5 = math.exp %4 : vector<1x512xf32>
    %cst = arith.constant 1.000000e+00 : f32
    %6 = vector.broadcast %cst : f32 to vector<1x512xf32>
    %7 = arith.addf %6, %5 : vector<1x512xf32>
    %8 = arith.divf %6, %7 : vector<1x512xf32>
    %9 = arith.mulf %1, %8 : vector<1x512xf32>
    %c0_6 = arith.constant 0 : index
    %c0_7 = arith.constant 0 : index
    %c0_8 = arith.constant 0 : index
    %10 = vector.load %arg3[%c0_6, %c0_7, %c0_8] : memref<1x1x512xf32, #tpu.memory_space<vmem>>, vector<1x1x512xf32>
    %11 = vector.shape_cast %10 : vector<1x1x512xf32> to vector<1x512xf32>
    %12 = vector.shape_cast %9 : vector<1x512xf32> to vector<1x1x512xf32>
    tpu.vector_store %arg3[%c0_6, %c0_7, %c0_8], %12 {strides = array<i32>} : memref<1x1x512xf32, #tpu.memory_space<vmem>>, vector<1x1x512xf32>,
    return
  }
  func.func @transform_0(%arg0: i32, %arg1: i32) -> (i32, i32, i32, i32) {
    %c0_i32 = arith.constant 0 : i32
    %c0_i32_0 = arith.constant 0 : i32
    %c0_i32_1 = arith.constant 0 : i32
    return %arg0, %c0_i32, %arg1, %c0_i32_0 : i32, i32, i32, i32
  }
  func.func @transform_1(%arg0: i32, %arg1: i32) -> (i32, i32, i32) {
    %c0_i32 = arith.constant 0 : i32
    %c0_i32_0 = arith.constant 0 : i32
    return %arg0, %arg1, %c0_i32 : i32, i32, i32
  }
}

</mosaic_0001>

<llo_original>
// kernel: tpu_custom_call.1
$region0: #{tpu_custom_call.1}
  #allocation0 [shape = 'u32[]', space=smem, size = 0x4, offset = 0x4, fixed_abs, tag = 'smem constant byte address 0x4 - core index']
  #allocation1 [shape = 'u32[72,128]{1,0:T(1,128)}', space=vmem, size = 0x9000, scoped, tag = 'internal scratch']
  %s0 = inlined_call_operand.hbm [shape: f32[2,2,1,512], index: 0, kind: input, shape index: {}]
  %s1 = inlined_call_operand.hbm [shape: f32[2,1,512], index: 1, kind: output, shape index: {}]
  %s2 = sld [smem:[#allocation0]]
  $region41: #{tpu_custom_call.1} parent=0
    _
  %s4 = ssub.s32 1, %s2
  %s5 = scalar_select 0, %s4, %s2
  $region1: #{tpu_custom_call.1} parent=0
    #allocation2 [shape = 'u8[8192]{0}', space=vmem, size = 0x2000, scoped, tag = 'input window, operand 0']
    #allocation3 [shape = 's32[2]{0}', space=sflag, size = 0x8, scoped, tag = 'scoped memory for tpu_custom_call.1']
    #allocation4 [shape = 's32[2]{0}', space=sflag, size = 0x8, scoped, tag = 'scoped memory for tpu_custom_call.1']
    #allocation5 [shape = 'u8[4096]{0}', space=vmem, size = 0x1000, scoped, tag = 'output window, operand 0']
    %6 = vsyncpa [#allocation3], 0
    %s7 = scalar_lea.sflag [#allocation3], 1
    %8 = vsyncpa %s7, 0
    %9 = vsyncpa [#allocation4], 0
    %s10 = scalar_lea.sflag [#allocation4], 1
    %11 = vsyncpa %s10, 0
    loop: start=0, step=1, limit=4
    $region2: #{tpu_custom_call.1} parent=1 // loop_pre_header
      _
    $region3: #{tpu_custom_call.1} parent=1 // loop_header
      %s13 = sphi 0, %s17
      %p14 = scmp.ge.s32.totalorder %s13, 4
      %s20 = sphi 0, %s32
      %s21 = sphi 0, %s28
      %s22 = sphi 0, %s20
      %s23 = sphi 0, %s21
      %s24 = sphi 0, %s22
      %s25 = sphi 0, %s23
      %s37 = sphi 0, %s39
      %s40 = sphi 0, %s37
      %s41 = sphi 0, %s40
      %s57 = sphi 0, %s41
      %s65 = sphi 0, %s67
      %s68 = sphi 0, %s65
      %s69 = sphi 0, %s68
      %s85 = sphi 0, %s69
    $region4: #{tpu_custom_call.1} parent=1 // loop_header_branch
      %16 = sbr.rel (%p14) target = $region8
    $region5: #{tpu_custom_call.1} parent=1 // loop_body
      %s18 = ssub.s32 %s13, 1
      %s19 = ssub.s32 %s13, 2
      %s26 = sadd.s32 1, %s21
      %p27 = scmp.ge.s32.totalorder %s26, 1
      %s28 = scalar_select %p27, 0, %s26
      %s29 = sadd.s32 1, %s20
      %s30 = scalar_select %p27, %s29, %s20
      %p31 = scmp.ge.s32.totalorder %s30, 2
      %s32 = scalar_select %p31, 0, %s30
      %s33 = ssub.s32 %s20, %s32
      %s34 = ssub.s32 %s21, %s28
      %s35 = sor.u32 %s33, %s34
      %p36 = scmp.eq.s32.totalorder %s35, 0
      %s38 = sadd.s32 %s37, 1
      %s39 = scalar_select %p36, %s37, %s38
      %p42 = pneg %p36
      %p43 = scmp.eq.s32.totalorder %s13, 1
      %p44 = por %p42, %p43
      %p45 = scmp.ne.s32.totalorder %s37, %s40
      %p46 = scmp.eq.s32.totalorder %s13, 0
      %p47 = por %p45, %p46
      %p48 = scmp.ne.s32.totalorder %s37, %s40
      %p49 = scmp.eq.s32.totalorder %s18, 1
      %p50 = por %p48, %p49
      %p51 = scmp.ne.s32.totalorder %s40, %s41
      %p52 = scmp.eq.s32.totalorder %s18, 0
      %p53 = por %p51, %p52
      %p54 = scmp.ne.s32.totalorder %s40, %s41
      %p55 = scmp.eq.s32.totalorder %s19, 1
      %p56 = por %p54, %p55
      %p58 = scmp.ne.s32.totalorder %s41, %s57
      %p59 = scmp.eq.s32.totalorder %s19, 0
      %p60 = por %p58, %p59
      %s61 = ssub.s32 %s20, %s32
      %s62 = ssub.s32 %s21, %s28
      %s63 = sor.u32 %s61, %s62
      %p64 = scmp.eq.s32.totalorder %s63, 0
      %s66 = sadd.s32 %s65, 1
      %s67 = scalar_select %p64, %s65, %s66
      %p70 = pneg %p64
      %p71 = scmp.eq.s32.totalorder %s13, 1
      %p72 = por %p70, %p71
      %p73 = scmp.ne.s32.totalorder %s65, %s68
      %p74 = scmp.eq.s32.totalorder %s13, 0
      %p75 = por %p73, %p74
      %p76 = scmp.ne.s32.totalorder %s65, %s68
      %p77 = scmp.eq.s32.totalorder %s18, 1
      %p78 = por %p76, %p77
      %p79 = scmp.ne.s32.totalorder %s68, %s69
      %p80 = scmp.eq.s32.totalorder %s18, 0
      %p81 = por %p79, %p80
      %p82 = scmp.ne.s32.totalorder %s68, %s69
      %p83 = scmp.eq.s32.totalorder %s19, 1
      %p84 = por %p82, %p83
      %p86 = scmp.ne.s32.totalorder %s69, %s85
      %p87 = scmp.eq.s32.totalorder %s19, 0
      %p88 = por %p86, %p87
      %p89 = scmp.le.s32.totalorder 1, %s13
      %p90 = scmp.lt.s32.totalorder %s13, 3
      %p91 = pnand %p89, %p90
      %p92 = pneg %p91
      // Predicated region
      $region9: #{tpu_custom_call.1} parent=5 // pred_check
        _
      $region10: #{tpu_custom_call.1} parent=5 // pred_check_branch
        %94 = sbr.rel (%p91) target = $region12
      $region11: #{tpu_custom_call.1} parent=5 // pred_region
        %s95 = ssub.s32 %s13, 1
      $region12: #{tpu_custom_call.1} parent=5 // pred_fallthru
        _
      %p96 = scmp.lt.s32.totalorder %s13, 2
      // Predicated region
      $region13: #{tpu_custom_call.1} parent=5 // pred_check
        %p97 = pneg %p96
      $region14: #{tpu_custom_call.1} parent=5 // pred_check_branch
        %99 = sbr.rel (%p97) target = $region16
      $region15: #{tpu_custom_call.1} parent=5 // pred_region
        // Predicated region
        $region17: #{tpu_custom_call.1} parent=15 // pred_check
          %p100 = pneg %p47
        $region18: #{tpu_custom_call.1} parent=15 // pred_check_branch
          %102 = sbr.rel (%p100) target = $region20
        $region19: #{tpu_custom_call.1} parent=15 // pred_region
          %s103 = sand.u32 %s37, 1
          %s104 = scalar_lea.sflag [#allocation3], %s103
          %s105 = sand.u32 %s37, 1
          %s106 = smul.addr %s105, 8
          %s107 = scalar_lea.vmem [#allocation2], %s106
          %109 = vsyncadd %s104, 0
          %s110 = smul.addr %s21, 4
          %s111 = smul.addr %s20, 8
          %s112 = sadd.s32 %s110, %s111
          %s113 = scalar_lea.hbm %s0, %s112
          %s114 = sshll.u32 %s113, 4
          %s115 = int_to_ptr.hbm [resolvable:$true] %s114
          %s116 = sshll.u32 %s107, 4
          %s117 = int_to_ptr.vmem [resolvable:$true] %s116
          %122 = dma.hbm_to_vmem [thread:$0]  %s115, 128, %s117, %s104, 64, 64, 4
        $region20: #{tpu_custom_call.1} parent=15 // pred_fallthru
          _
      $region16: #{tpu_custom_call.1} parent=5 // pred_fallthru
        _
      %p123 = scmp.le.s32.totalorder 1, %s13
      %p124 = scmp.lt.s32.totalorder %s13, 3
      %p125 = pnand %p123, %p124
      %p126 = pneg %p125
      // Predicated region
      $region21: #{tpu_custom_call.1} parent=5 // pred_check
        _
      $region22: #{tpu_custom_call.1} parent=5 // pred_check_branch
        %128 = sbr.rel (%p125) target = $region24
      $region23: #{tpu_custom_call.1} parent=5 // pred_region
        %s129 = ssub.s32 %s13, 1
        %s130 = sand.u32 %s40, 1
        %s131 = scalar_lea.sflag [#allocation3], %s130
        %s132 = sand.u32 %s40, 1
        %s133 = smul.addr %s132, 8
        %s134 = scalar_lea.vmem [#allocation2], %s133
        // Predicated region
        $region25: #{tpu_custom_call.1} parent=23 // pred_check
          %p135 = pneg %p53
        $region26: #{tpu_custom_call.1} parent=23 // pred_check_branch
          %137 = sbr.rel (%p135) target = $region28
        $region27: #{tpu_custom_call.1} parent=23 // pred_region
          %139 = dma.done %s131, 128
        $region28: #{tpu_custom_call.1} parent=23 // pred_fallthru
          _
        %s140 = sand.u32 %s40, 1
        %s141 = scalar_lea.sflag [#allocation3], %s140
        %s142 = sand.u32 %s40, 1
        %s143 = smul.addr %s142, 8
        %s144 = scalar_lea.vmem [#allocation2], %s143
        %p145 = pneg %p53
        %p146 = pneg %p50
        %p147 = pneg %p81
        %p148 = pneg %p78
        %s149 = sand.u32 %s68, 1
        %s150 = scalar_lea.sflag [#allocation4], %s149
        %s151 = sand.u32 %s68, 1
        %s152 = smul.addr %s151, 4
        %s153 = scalar_lea.vmem [#allocation5], %s152
        %v154 = vld [vmem:[%s134] sm:$0xf]
        %s155 = scalar_lea.vmem %s134, 4 [#allocation2]
        %v156 = vld [vmem:[%s155] sm:$0xf]
        %v157 = vxor.u32 %v156, 2147483648
        %v158 = vmul.f32 %v157, 1.442695
        %v159 = vpow.pop %v158
        %v160 = vadd.f32 %v159, 1.0
        %v161 = vrcp.pop %v160
        %v162 = vmul.f32 %v160, %v161
        %v163 = vsub.f32 1.0, %v162
        %v164 = vmul.f32 %v161, %v163
        %v165 = vadd.f32 %v161, %v164
        %vm166 = vweird.f32 %v160
        %vm167 = vweird.f32 %v161
        %vm168 = vmor %vm166, %vm167
        %v169 = vsel %vm168, %v161, %v165
        %v170 = vand.u32 2147483647, %v160
        %vm171 = vcmp.eq.f32.partialorder %v170, 8.507059e+37
        %v172 = vand.u32 %v160, 2147483648
        %v173 = vor.u32 1.1754944e-38, %v172
        %v174 = vsel %vm171, %v173, %v169
        %v175 = vmul.f32 1.0, %v174
        %v176 = vmul.f32 %v154, %v175
        %v177 = vlaneseq
        %vm178 = vcmp.ge.s32.totalorder %v177, 0
        %vm179 = vcmp.lt.s32.totalorder %v177, 512
        %vm180 = vmand %vm178, %vm179
        %181 = vst.msk [vmem:[%s153] sm:$0xf] %vm180, %v176
        %s182 = sand.u32 %s68, 1
        %s183 = scalar_lea.sflag [#allocation4], %s182
        %s184 = sand.u32 %s68, 1
        %s185 = smul.addr %s184, 4
        %s186 = scalar_lea.vmem [#allocation5], %s185
        // Predicated region
        $region29: #{tpu_custom_call.1} parent=23 // pred_check
          %p187 = pneg %p78
        $region30: #{tpu_custom_call.1} parent=23 // pred_check_branch
          %189 = sbr.rel (%p187) target = $region32
        $region31: #{tpu_custom_call.1} parent=23 // pred_region
          %191 = vsyncadd %s183, 0
          %s192 = smul.addr %s23, 4
          %s193 = smul.addr %s22, 4
          %s194 = sadd.s32 %s192, %s193
          %s195 = scalar_lea.hbm %s1, %s194
          %s197 = sshll.u32 %s186, 4
          %s198 = int_to_ptr.vmem [resolvable:$true] %s197
          %s199 = sshll.u32 %s195, 4
          %s200 = int_to_ptr.hbm [resolvable:$true] %s199
          %202 = dma.vmem_to_hbm [thread:$0]  %s198, 64, %s200, %s183
        $region32: #{tpu_custom_call.1} parent=23 // pred_fallthru
          _
      $region24: #{tpu_custom_call.1} parent=5 // pred_fallthru
        _
      %p203 = scmp.le.s32.totalorder 2, %s13
      // Predicated region
      $region33: #{tpu_custom_call.1} parent=5 // pred_check
        %p204 = pneg %p203
      $region34: #{tpu_custom_call.1} parent=5 // pred_check_branch
        %206 = sbr.rel (%p204) target = $region36
      $region35: #{tpu_custom_call.1} parent=5 // pred_region
        %s207 = ssub.s32 %s13, 2
        // Predicated region
        $region37: #{tpu_custom_call.1} parent=35 // pred_check
          %p208 = pneg %p84
        $region38: #{tpu_custom_call.1} parent=35 // pred_check_branch
          %210 = sbr.rel (%p208) target = $region40
        $region39: #{tpu_custom_call.1} parent=35 // pred_region
          %s211 = sand.u32 %s69, 1
          %s212 = scalar_lea.sflag [#allocation4], %s211
          %s213 = sand.u32 %s69, 1
          %s214 = smul.addr %s213, 4
          %s215 = scalar_lea.vmem [#allocation5], %s214
          %217 = dma.done %s212, 64
        $region40: #{tpu_custom_call.1} parent=35 // pred_fallthru
          _
      $region36: #{tpu_custom_call.1} parent=5 // pred_fallthru
        _
    $region6: #{tpu_custom_call.1} parent=1 // loop_footer
      %s17 = sadd.s32 1, %s13
    $region7: #{tpu_custom_call.1} parent=1 // loop_footer_branch
      %12 = sbr.rel target = $region3
    $region8: #{tpu_custom_call.1} parent=1 // loop_exit
      _
    %218 = vsyncpa [#allocation3], 1
    %s219 = scalar_lea.sflag [#allocation3], 1
    %220 = vsyncpa %s219, 1
    %221 = vsyncpa [#allocation4], 1
    %s222 = scalar_lea.sflag [#allocation4], 1
    %223 = vsyncpa %s222, 1

</llo_original>
